<compile_context>
chip_gen: v6e
topology: v6e:2x2x1
jax: 0.10.0
libtpu: 0.0.40
codegen_flags: <defaults>
</compile_context>

<pallas_src>
import jax
import jax.numpy as jnp
from jax.experimental import pallas as pl
from jax.experimental.pallas import tpu as pltpu

_LANES = 128
# Target bytes per VMEM block (per buffer). 4 MiB moves in ~1.2 us on v7x HBM,
# so the ~0.35 us/step pipeline overhead is well amortized on every generation.
_TARGET_BLOCK_BYTES = 4 << 20
# 2 input + 2 output double-buffers at 4 MiB = 16 MiB; raise the scoped limit
# explicitly (v5e default is 16 MiB) while staying far under every chip's
# physical VMEM (64 MiB on v7x, 128 MiB on v5e/v6e).
_VMEM_LIMIT_BYTES = 40 << 20


def _sublane_multiple(dtype):
    """Minimum row-tile multiple for this dtype: (8,128) f32, (16,128) bf16, (32,128) int8/fp8."""
    itemsize = jnp.dtype(dtype).itemsize
    return max(8, 32 // itemsize)


def _h_swish_kernel(x_ref, o_ref):
    """Elementwise h_swish on one (row_tile, 128) lane-dense block."""
    x = x_ref[...]
    # relu6(x + 3) * (1/6): all VPU ops, stays in the input dtype.
    # (Multiply-by-1/6 vs divide-by-6 is <= 1 ulp off the PyTorch reference.)
    o_ref[...] = x * jnp.clip(x + 3.0, 0.0, 6.0) * (1.0 / 6.0)


def h_swish(x, *, donate_input=False):
    """JAX/Pallas equivalent of h_swish.forward for an arbitrary-shaped tensor."""
    orig_shape = x.shape
    dtype = x.dtype
    n = x.size
    if n == 0:
        return x

    itemsize = jnp.dtype(dtype).itemsize
    cols = _LANES

    # Lane-dense view: (rows, 128). Fast path (n % 128 == 0) is metadata-only.
    padded_n = pl.cdiv(n, cols) * cols
    rows = padded_n // cols
    ragged = padded_n != n

    flat = x.reshape(-1)
    if ragged:
        # Rare fallback: pad only to the next lane multiple (<=127 elements).
        flat = jnp.pad(flat, (0, padded_n - n))
    x2d = flat.reshape(rows, cols)

    # Dtype-aware row tile: multiple of the sublane packing, ~4 MiB per block.
    sub = _sublane_multiple(dtype)
    target_rows = _TARGET_BLOCK_BYTES // (cols * itemsize)
    target_rows = max(sub, (target_rows // sub) * sub)

    if rows <= target_rows:
        # Whole array in one block; a full-extent dim is always a legal block dim.
        row_tile = rows
        grid = (1,)
    else:
        row_tile = target_rows
        # cdiv grid: Pallas masks the ragged last row-block (no pre-padding of rows).
        grid = (pl.cdiv(rows, row_tile),)

    out2d = pl.pallas_call(
        _h_swish_kernel,
        out_shape=jax.ShapeDtypeStruct((rows, cols), dtype),
        grid=grid,
        in_specs=[pl.BlockSpec((row_tile, cols), lambda i: (i, 0))],
        out_specs=pl.BlockSpec((row_tile, cols), lambda i: (i, 0)),
        compiler_params=pltpu.CompilerParams(
            # "parallel" lets v7x shard the axis across its two TensorCores;
            # harmless on single-TC v5e/v6e.
            dimension_semantics=("parallel",),
            vmem_limit_bytes=_VMEM_LIMIT_BYTES,
        ),
        cost_estimate=pl.CostEstimate(
            flops=5 * n,
            transcendentals=0,
            bytes_accessed=2 * n * itemsize,
        ),
        input_output_aliases=({0: 0} if donate_input else {}),
    )(x2d)

    out = out2d.reshape(-1)
    if ragged:
        out = out[:n]
    return out.reshape(orig_shape)


def _reference(x):
    """Pure-JAX reference: x * relu6(x + 3) / 6."""
    return x * jnp.clip(x + 3.0, 0.0, 6.0) / 6.0


if __name__ == "__main__":
    key = jax.random.PRNGKey(0)

    # Primary shape consistent with the module's elementwise NCHW forward.
    x = jax.random.normal(key, (2, 4, 16, 16), dtype=jnp.float32) * 4.0
    out = jax.block_until_ready(h_swish(x))
    ref = _reference(x)
    assert out.shape == x.shape
    assert out.dtype == x.dtype
    assert jnp.allclose(out, ref, atol=1e-6), "f32 mismatch vs reference"

    k1, k2 = jax.random.split(key)

    # Ragged element count (105 elements): exercises the minimal-pad fallback.
    x_ragged = jax.random.normal(k1, (3, 5, 7), dtype=jnp.float32) * 4.0
    out_r = jax.block_until_ready(h_swish(x_ragged))
    assert out_r.shape == x_ragged.shape
    assert jnp.allclose(out_r, _reference(x_ragged), atol=1e-6), "ragged mismatch"

    # bf16 path: exercises the dtype-aware (16,128) sublane rounding.
    x_bf16 = (jax.random.normal(k2, (2, 4, 16, 16), dtype=jnp.float32) * 4.0).astype(jnp.bfloat16)
    out_b = jax.block_until_ready(h_swish(x_bf16))
    assert out_b.dtype == jnp.bfloat16
    ref_b = _reference(x_bf16)
    assert jnp.allclose(out_b.astype(jnp.float32), ref_b.astype(jnp.float32),
                        atol=5e-2, rtol=5e-2), "bf16 mismatch vs reference"

    print("KERNEL_OK")
</pallas_src>

<mosaic_0001>
module attributes {stable_mosaic.version = 11 : i64} {
  func.func @_h_swish_kernel(%arg0: i32, %arg1: memref<16x128xf32, #tpu.memory_space<vmem>>, %arg2: memref<16x128xf32, #tpu.memory_space<vmem>>) attributes {dimension_semantics = [#tpu.dimension_semantics<parallel>], iteration_bounds = array<i64: 1>, scalar_prefetch = 0 : i64, scratch_operands = 0 : i64, tpu.core_type = #tpu.core_type<tc>, window_params = [{transform_indices = @transform_0, window_bounds = array<i64: 16, 128>}, {transform_indices = @transform_1, window_bounds = array<i64: 16, 128>}]} {
    %c0 = arith.constant 0 : index
    %c0_0 = arith.constant 0 : index
    %0 = vector.load %arg1[%c0, %c0_0] : memref<16x128xf32, #tpu.memory_space<vmem>>, vector<16x128xf32>
    %cst = arith.constant 3.000000e+00 : f32
    %1 = vector.broadcast %cst : f32 to vector<16x128xf32>
    %2 = arith.addf %0, %1 : vector<16x128xf32>
    %cst_1 = arith.constant 0.000000e+00 : f32
    %cst_2 = arith.constant 6.000000e+00 : f32
    %3 = vector.broadcast %cst_1 : f32 to vector<16x128xf32>
    %4 = arith.maximumf %3, %2 : vector<16x128xf32>
    %5 = vector.broadcast %cst_2 : f32 to vector<16x128xf32>
    %6 = arith.minimumf %5, %4 : vector<16x128xf32>
    %7 = arith.mulf %0, %6 : vector<16x128xf32>
    %cst_3 = arith.constant 0.166666672 : f32
    %8 = vector.broadcast %cst_3 : f32 to vector<16x128xf32>
    %9 = arith.mulf %7, %8 : vector<16x128xf32>
    %c0_4 = arith.constant 0 : index
    %c0_5 = arith.constant 0 : index
    %10 = vector.load %arg2[%c0_4, %c0_5] : memref<16x128xf32, #tpu.memory_space<vmem>>, vector<16x128xf32>
    tpu.vector_store %arg2[%c0_4, %c0_5], %9 {strides = array<i32>} : memref<16x128xf32, #tpu.memory_space<vmem>>, vector<16x128xf32>,
    return
  }
  func.func @transform_0(%arg0: i32) -> (i32, i32) {
    %c0_i32 = arith.constant 0 : i32
    %c0_i32_0 = arith.constant 0 : i32
    return %arg0, %c0_i32 : i32, i32
  }
  func.func @transform_1(%arg0: i32) -> (i32, i32) {
    %c0_i32 = arith.constant 0 : i32
    %c0_i32_0 = arith.constant 0 : i32
    return %arg0, %c0_i32 : i32, i32
  }
}

</mosaic_0001>

<llo_original>
// kernel: tpu_custom_call.1
$region0: #{tpu_custom_call.1}
  #allocation0 [shape = 'u32[]', space=smem, size = 0x4, offset = 0x4, fixed_abs, tag = 'smem constant byte address 0x4 - core index']
  #allocation1 [shape = 'u32[144,128]{1,0:T(1,128)}', space=vmem, size = 0x12000, scoped, tag = 'internal scratch']
  %s0 = inlined_call_operand.hbm [shape: f32[16,128], index: 0, kind: input, shape index: {}]
  %s1 = inlined_call_operand.hbm [shape: f32[16,128], index: 1, kind: output, shape index: {}]
  %s2 = sld [smem:[#allocation0]]
  $region18: #{tpu_custom_call.1} parent=0
    _
  %s4 = ssub.s32 1, %s2
  %s5 = scalar_select 0, %s4, %s2
  $region1: #{tpu_custom_call.1} parent=0
    #allocation2 [shape = 'u8[8192]{0}', space=vmem, size = 0x2000, scoped, tag = 'input window, operand 0, single buffered']
    #allocation3 [shape = 's32[1]{0}', space=sflag, size = 0x4, scoped, tag = 'scoped memory for tpu_custom_call.1']
    #allocation4 [shape = 's32[1]{0}', space=sflag, size = 0x4, scoped, tag = 'scoped memory for tpu_custom_call.1']
    #allocation5 [shape = 'u8[8192]{0}', space=vmem, size = 0x2000, scoped, tag = 'output window, operand 0, single buffered']
    %6 = vsyncpa [#allocation3], 0
    %7 = vsyncpa [#allocation4], 0
    // Predicated region
    $region2: #{tpu_custom_call.1} parent=1 // pred_check
      _
    $region3: #{tpu_custom_call.1} parent=1 // pred_check_branch
      %9 = sbr.rel (0) target = $region5
    $region4: #{tpu_custom_call.1} parent=1 // pred_region
      %s11 = ssub.s32 256, 256
      %12 = vsyncadd [#allocation3], %s11
      %s13 = sshll.u32 [#allocation2], 4
      %s14 = int_to_ptr.vmem [resolvable:$true] %s13
      %19 = dma.hbm_to_vmem [thread:$0]  %s0, 256, %s14, [#allocation3], 128, 128, 8
    $region5: #{tpu_custom_call.1} parent=1 // pred_fallthru
      _
    // Predicated region
    $region6: #{tpu_custom_call.1} parent=1 // pred_check
      _
    $region7: #{tpu_custom_call.1} parent=1 // pred_check_branch
      %21 = sbr.rel (0) target = $region9
    $region8: #{tpu_custom_call.1} parent=1 // pred_region
      %22 = dma.done [#allocation3], 256
    $region9: #{tpu_custom_call.1} parent=1 // pred_fallthru
      _
    %v23 = vld [vmem:[#allocation2] sm:$0xff]
    %v24 = vld [vmem:[#allocation2 + $0x8] sm:$0xff]
    %v25 = vadd.f32 %v23, 3.0
    %v26 = vadd.f32 %v24, 3.0
    %v27 = vmax.f32 %v25, 0.0
    %v28 = vmax.f32 %v26, 0.0
    %v29 = vmin.f32 %v27, 6.0
    %v30 = vmin.f32 %v28, 6.0
    %v31 = vmul.f32 %v23, %v29
    %v32 = vmul.f32 %v24, %v30
    %v33 = vmul.f32 %v31, 0.16666667
    %v34 = vmul.f32 %v32, 0.16666667
    %35 = vst [vmem:[#allocation5] sm:$0xff] %v33
    %36 = vst [vmem:[#allocation5 + $0x8] sm:$0xff] %v34
    // Predicated region
    $region10: #{tpu_custom_call.1} parent=1 // pred_check
      _
    $region11: #{tpu_custom_call.1} parent=1 // pred_check_branch
      %38 = sbr.rel (0) target = $region13
    $region12: #{tpu_custom_call.1} parent=1 // pred_region
      %s40 = ssub.s32 256, 256
      %41 = vsyncadd [#allocation4], %s40
      %s42 = sshll.u32 [#allocation5], 4
      %s43 = int_to_ptr.vmem [resolvable:$true] %s42
      %48 = dma.vmem_to_hbm [thread:$0]  %s43, 256, %s1, [#allocation4], 128, 128, 8
    $region13: #{tpu_custom_call.1} parent=1 // pred_fallthru
      _
    // Predicated region
    $region14: #{tpu_custom_call.1} parent=1 // pred_check
      _
    $region15: #{tpu_custom_call.1} parent=1 // pred_check_branch
      %50 = sbr.rel (0) target = $region17
    $region16: #{tpu_custom_call.1} parent=1 // pred_region
      %51 = dma.done [#allocation4], 256
    $region17: #{tpu_custom_call.1} parent=1 // pred_fallthru
      _
    %52 = vsyncpa [#allocation3], 1
    %53 = vsyncpa [#allocation4], 1

</llo_original>
